<compile_context>
chip_gen: v5e
topology: v5e:2x2
jax: 0.10.0
libtpu: 0.0.40
codegen_flags: <defaults>
</compile_context>

<pallas_src>
import functools

import jax
import jax.numpy as jnp
from jax.experimental import pallas as pl
from jax.experimental.pallas import tpu as pltpu

ALPHA = 1.0
GAMMA = 2  # integer power -> integer_pow on the VPU

LANES = 128                    # row width: 64 samples x 2 interleaved classes
SAMPLES_PER_ROW = LANES // 2   # 64
MIN_BLOCK_ROWS = 32            # multiple of the int8 native (32, 128) sublane packing
MAX_BLOCK_ROWS = 8192          # 8192 x 128 f32 = 4 MiB of logits per block


def _focal_loss_kernel(x_ref, oh_ref, out_ref, acc_ref, *,
                       total_rows, block_rows, blocks_per_stripe, alpha, gamma):
    s = pl.program_id(0)   # stripe (parallel / core_parallel)
    i = pl.program_id(1)   # block within stripe (arbitrary / reduction)

    @pl.when(i == 0)
    def _():
        acc_ref[...] = jnp.zeros_like(acc_ref)

    # (block_rows, 128): 64 samples per row, classes interleaved along lanes.
    x = x_ref[...].astype(jnp.float32)
    neg = oh_ref[...] != 0                       # int8 one-hot in the same flat layout

    # BCE(x, onehot) = softplus((1 - 2*onehot) * x); only a sign flip depends on the label.
    z = jnp.where(neg, -x, x)
    e = jnp.exp(-jnp.abs(x))                     # == exp(-|z|); single EUP exp
    bce = jnp.maximum(z, 0.0) + jnp.log1p(e)
    pt = jnp.where(z >= 0.0, e, 1.0) / (1.0 + e)  # == exp(-bce), exact
    f_loss = alpha * (1.0 - pt) ** gamma * bce

    b = s * blocks_per_stripe + i
    row0 = b * block_rows
    is_full = row0 + block_rows <= total_rows

    # Hot path: full block, no mask ops at all.
    @pl.when(is_full)
    def _():
        acc_ref[...] += f_loss

    # Only the ragged / out-of-range block pays for the row mask.
    @pl.when(jnp.logical_not(is_full))
    def _():
        rows = row0 + jax.lax.broadcasted_iota(jnp.int32, f_loss.shape, 0)
        acc_ref[...] += jnp.where(rows < total_rows, f_loss, 0.0)

    @pl.when(i == pl.num_programs(1) - 1)
    def _():
        stripe_sum = jnp.sum(acc_ref[...])       # single cross-lane reduce per stripe
        rr = jax.lax.broadcasted_iota(jnp.int32, (8, 128), 0)
        cc = jax.lax.broadcasted_iota(jnp.int32, (8, 128), 1)
        out_ref[...] = jnp.where((rr == 0) & (cc == 0), stripe_sum, 0.0)


def _focal_sum_ref(x, t):
    """Pure-JAX focal-loss *sum* (used for the tiny sub-row tail)."""
    x = x.astype(jnp.float32)
    oh = jax.nn.one_hot(t, 2, dtype=jnp.float32)
    bce = jnp.maximum(x, 0.0) - x * oh + jnp.log1p(jnp.exp(-jnp.abs(x)))
    pt = jnp.exp(-bce)
    return jnp.sum(ALPHA * (1.0 - pt) ** GAMMA * bce)


def focal_loss(inputs, targets, *, n_stripes=1, core_parallel=False):
    """inputs: (N, 2) float logits; targets: (N,) int labels in {0, 1}. Returns mean focal loss.

    On v7x pass n_stripes=2, core_parallel=True to split the stripe axis across both
    TensorCores; on single-core v5e/v6e keep the defaults.
    """
    n, c = inputs.shape
    assert c == 2, "FocalLoss_1 one-hots to num_classes=2"

    n_main = (n // SAMPLES_PER_ROW) * SAMPLES_PER_ROW
    tail_sum = jnp.float32(0.0)
    if n_main < n:
        # TODO(synk): sub-row remainder (<64 samples) finished in plain JAX; negligible work.
        tail_sum = _focal_sum_ref(inputs[n_main:], targets[n_main:])
    if n_main == 0:
        return tail_sum / jnp.float32(n * c)

    if n_main == n:
        x_main, t_main = inputs, targets          # free reshape path, no copies
    else:
        # One slice copy of the main logits only when N % 64 != 0 (unavoidable to refold).
        x_main, t_main = inputs[:n_main], targets[:n_main]

    r_rows = n_main // SAMPLES_PER_ROW
    # Free, contiguous refold of the row-major (N, 2) buffer: (R, 128), classes on lane parity.
    x2 = x_main.reshape(r_rows, LANES)
    # int8 one-hot in the identical flat layout (2 B/sample of HBM traffic).
    oh2 = jax.nn.one_hot(t_main, 2, dtype=jnp.int8).reshape(r_rows, LANES)

    if r_rows < MIN_BLOCK_ROWS:
        # Tiny inputs: pad rows to one minimum block (<= 16 KiB copy); padded rows masked.
        pad = MIN_BLOCK_ROWS - r_rows
        x2 = jnp.pad(x2, ((0, pad), (0, 0)))
        oh2 = jnp.pad(oh2, ((0, pad), (0, 0)))
        r_arr = MIN_BLOCK_ROWS
        block_rows = MIN_BLOCK_ROWS
    else:
        r_arr = r_rows
        # Multiple of 32 (int8 sublane packing), never larger than the array; last block ragged.
        block_rows = min(MAX_BLOCK_ROWS, (r_rows // MIN_BLOCK_ROWS) * MIN_BLOCK_ROWS)

    total_blocks = pl.cdiv(r_arr, block_rows)
    blocks_per_stripe = pl.cdiv(total_blocks, n_stripes)

    def in_index(s, i):
        # Clamp so over-provisioned stripe blocks (n_stripes > 1) re-read the last block;
        # the kernel masks their contribution to exactly zero.
        b = jnp.minimum(s * blocks_per_stripe + i, total_blocks - 1)
        return (b, 0)

    kernel = functools.partial(
        _focal_loss_kernel,
        total_rows=r_rows, block_rows=block_rows,
        blocks_per_stripe=blocks_per_stripe, alpha=ALPHA, gamma=GAMMA)

    if core_parallel:
        dim_sem = (pltpu.CORE_PARALLEL, pltpu.ARBITRARY)   # v7x: honest 2-TC split
    else:
        dim_sem = ("parallel", "arbitrary")

    partials = pl.pallas_call(
        kernel,
        out_shape=jax.ShapeDtypeStruct((8, 128 * n_stripes), jnp.float32),
        grid_spec=pltpu.PrefetchScalarGridSpec(
            num_scalar_prefetch=0,
            grid=(n_stripes, blocks_per_stripe),
            in_specs=[
                pl.BlockSpec((block_rows, LANES), in_index),   # logits, f32/bf16
                pl.BlockSpec((block_rows, LANES), in_index),   # one-hot, int8
            ],
            out_specs=pl.BlockSpec((8, 128), lambda s, i: (0, s)),
            scratch_shapes=[pltpu.VMEM((block_rows, LANES), jnp.float32)],
        ),
        compiler_params=pltpu.CompilerParams(dimension_semantics=dim_sem),
    )(x2, oh2)

    return (jnp.sum(partials) + tail_sum) / jnp.float32(n * c)


def _focal_loss_ref(inputs, targets):
    """Pure-JAX reference mirroring the PyTorch module."""
    return _focal_sum_ref(inputs, targets) / jnp.float32(inputs.size)


if __name__ == "__main__":
    key = jax.random.PRNGKey(0)
    k_x, k_t = jax.random.split(key)

    loss_fn = jax.jit(focal_loss)

    # 1) Small, divisible-by-64 batch: single (32, 128) block, pure free-reshape path.
    N = 64
    inputs = jax.random.normal(k_x, (N, 2), dtype=jnp.float32)
    targets = jax.random.randint(k_t, (N,), 0, 2, dtype=jnp.int32)
    loss = loss_fn(inputs, targets)
    jax.block_until_ready(loss)
    ref = _focal_loss_ref(inputs, targets)
    assert jnp.allclose(loss, ref, rtol=1e-5, atol=1e-6), (loss, ref)

    # 2) Non-multiple N: exercises the JAX sub-row tail (40 samples) + small-row padding.
    N2 = 1000
    k_x2, k_t2 = jax.random.split(k_x)
    inputs2 = jax.random.normal(k_x2, (N2, 2), dtype=jnp.float32)
    targets2 = jax.random.randint(k_t2, (N2,), 0, 2, dtype=jnp.int32)
    loss2 = loss_fn(inputs2, targets2)
    jax.block_until_ready(loss2)
    ref2 = _focal_loss_ref(inputs2, targets2)
    assert jnp.allclose(loss2, ref2, rtol=1e-5, atol=1e-6), (loss2, ref2)

    # 3) Multi-block grid with a ragged last block (100 rows, 96-row blocks),
    #    plus the 2-stripe variant used on v7x (stripe axis kept "parallel" here).
    N3 = 6400
    k_x3, k_t3 = jax.random.split(k_x2)
    inputs3 = jax.random.normal(k_x3, (N3, 2), dtype=jnp.float32)
    targets3 = jax.random.randint(k_t3, (N3,), 0, 2, dtype=jnp.int32)
    ref3 = _focal_loss_ref(inputs3, targets3)

    loss3 = loss_fn(inputs3, targets3)
    jax.block_until_ready(loss3)
    assert jnp.allclose(loss3, ref3, rtol=1e-5, atol=1e-6), (loss3, ref3)

    loss3s = jax.jit(functools.partial(focal_loss, n_stripes=2))(inputs3, targets3)
    jax.block_until_ready(loss3s)
    assert jnp.allclose(loss3s, ref3, rtol=1e-5, atol=1e-6), (loss3s, ref3)

    print("KERNEL_OK")
</pallas_src>

<mosaic_0001>
module attributes {stable_mosaic.version = 11 : i64} {
  func.func @_focal_loss_kernel(%arg0: i32, %arg1: i32, %arg2: memref<32x128xf32, #tpu.memory_space<vmem>>, %arg3: memref<32x128xi8, #tpu.memory_space<vmem>>, %arg4: memref<8x128xf32, #tpu.memory_space<vmem>>, %arg5: memref<32x128xf32, #tpu.memory_space<vmem>>) attributes {dimension_semantics = [#tpu.dimension_semantics<parallel>, #tpu.dimension_semantics<arbitrary>], iteration_bounds = array<i64: 1, 1>, scalar_prefetch = 0 : i64, scratch_operands = 1 : i64, tpu.core_type = #tpu.core_type<tc>, window_params = [{transform_indices = @transform_0, window_bounds = array<i64: 32, 128>}, {transform_indices = @transform_1, window_bounds = array<i64: 32, 128>}, {transform_indices = @transform_2, window_bounds = array<i64: 8, 128>}]} {
    %c0_i32 = arith.constant 0 : i32
    %0 = arith.cmpi eq, %arg1, %c0_i32 : i32
    %1 = arith.extui %0 : i1 to i32
    %c0_i32_0 = arith.constant 0 : i32
    %2 = arith.cmpi ne, %1, %c0_i32_0 : i32
    scf.if %2 {
      %cst_17 = arith.constant 0.000000e+00 : f32
      %44 = vector.broadcast %cst_17 : f32 to vector<32x128xf32>
      %c0_18 = arith.constant 0 : index
      %c0_19 = arith.constant 0 : index
      %45 = vector.load %arg5[%c0_18, %c0_19] : memref<32x128xf32, #tpu.memory_space<vmem>>, vector<32x128xf32>
      tpu.vector_store %arg5[%c0_18, %c0_19], %44 {strides = array<i32>} : memref<32x128xf32, #tpu.memory_space<vmem>>, vector<32x128xf32>,
    } else {
    }
    %c0 = arith.constant 0 : index
    %c0_1 = arith.constant 0 : index
    %3 = vector.load %arg2[%c0, %c0_1] : memref<32x128xf32, #tpu.memory_space<vmem>>, vector<32x128xf32>
    %c0_2 = arith.constant 0 : index
    %c0_3 = arith.constant 0 : index
    %4 = vector.load %arg3[%c0_2, %c0_3] : memref<32x128xi8, #tpu.memory_space<vmem>>, vector<32x128xi8>
    %c0_i8 = arith.constant 0 : i8
    %5 = vector.broadcast %c0_i8 : i8 to vector<32x128xi8>
    %6 = arith.cmpi ne, %4, %5 : vector<32x128xi8>
    %cst = arith.constant 0.000000e+00 : f32
    %7 = vector.broadcast %cst : f32 to vector<32x128xf32>
    %8 = arith.subf %7, %3 : vector<32x128xf32>
    %9 = arith.select %6, %8, %3 : vector<32x128xi1>, vector<32x128xf32>
    %10 = math.absf %3 : vector<32x128xf32>
    %cst_4 = arith.constant 0.000000e+00 : f32
    %11 = vector.broadcast %cst_4 : f32 to vector<32x128xf32>
    %12 = arith.subf %11, %10 : vector<32x128xf32>
    %13 = math.exp %12 : vector<32x128xf32>
    %cst_5 = arith.constant 0.000000e+00 : f32
    %14 = vector.broadcast %cst_5 : f32 to vector<32x128xf32>
    %15 = arith.maximumf %9, %14 : vector<32x128xf32>
    %16 = math.log1p %13 : vector<32x128xf32>
    %17 = arith.addf %15, %16 : vector<32x128xf32>
    %cst_6 = arith.constant 0.000000e+00 : f32
    %18 = vector.broadcast %cst_6 : f32 to vector<32x128xf32>
    %19 = arith.cmpf oge, %9, %18 : vector<32x128xf32>
    %cst_7 = arith.constant 1.000000e+00 : f32
    %20 = vector.broadcast %cst_7 : f32 to vector<32x128xf32>
    %21 = arith.select %19, %13, %20 : vector<32x128xi1>, vector<32x128xf32>
    %cst_8 = arith.constant 1.000000e+00 : f32
    %22 = vector.broadcast %cst_8 : f32 to vector<32x128xf32>
    %23 = arith.addf %22, %13 : vector<32x128xf32>
    %24 = arith.divf %21, %23 : vector<32x128xf32>
    %cst_9 = arith.constant 1.000000e+00 : f32
    %25 = vector.broadcast %cst_9 : f32 to vector<32x128xf32>
    %26 = arith.subf %25, %24 : vector<32x128xf32>
    %27 = arith.mulf %26, %26 : vector<32x128xf32>
    %cst_10 = arith.constant 1.000000e+00 : f32
    %28 = vector.broadcast %cst_10 : f32 to vector<32x128xf32>
    %29 = arith.mulf %28, %27 : vector<32x128xf32>
    %30 = arith.mulf %29, %17 : vector<32x128xf32>
    %c1_i32 = arith.constant 1 : i32
    %31 = arith.muli %arg0, %c1_i32 : i32
    %32 = arith.addi %31, %arg1 : i32
    %c32_i32 = arith.constant 32 : i32
    %33 = arith.muli %32, %c32_i32 : i32
    %c32_i32_11 = arith.constant 32 : i32
    %34 = arith.addi %33, %c32_i32_11 : i32
    %c1_i32_12 = arith.constant 1 : i32
    %35 = arith.cmpi sle, %34, %c1_i32_12 : i32
    %36 = arith.extui %35 : i1 to i32
    %c0_i32_13 = arith.constant 0 : i32
    %37 = arith.cmpi ne, %36, %c0_i32_13 : i32
    scf.if %37 {
      %c0_17 = arith.constant 0 : index
      %c0_18 = arith.constant 0 : index
      %44 = vector.load %arg5[%c0_17, %c0_18] : memref<32x128xf32, #tpu.memory_space<vmem>>, vector<32x128xf32>
      %45 = arith.addf %44, %30 : vector<32x128xf32>
      %c0_19 = arith.constant 0 : index
      %c0_20 = arith.constant 0 : index
      %46 = vector.load %arg5[%c0_19, %c0_20] : memref<32x128xf32, #tpu.memory_space<vmem>>, vector<32x128xf32>
      tpu.vector_store %arg5[%c0_19, %c0_20], %45 {strides = array<i32>} : memref<32x128xf32, #tpu.memory_space<vmem>>, vector<32x128xf32>,
    } else {
    }
    %true = arith.constant true
    %38 = arith.xori %35, %true : i1
    %39 = arith.extui %38 : i1 to i32
    %c0_i32_14 = arith.constant 0 : i32
    %40 = arith.cmpi ne, %39, %c0_i32_14 : i32
    scf.if %40 {
      %44 = tpu.iota {dimensions = array<i32: 0>} : vector<32x128xi32>
      %45 = vector.broadcast %33 : i32 to vector<32x128xi32>
      %46 = arith.addi %45, %44 : vector<32x128xi32>
      %c0_17 = arith.constant 0 : index
      %c0_18 = arith.constant 0 : index
      %47 = vector.load %arg5[%c0_17, %c0_18] : memref<32x128xf32, #tpu.memory_space<vmem>>, vector<32x128xf32>
      %c1_i32_19 = arith.constant 1 : i32
      %48 = vector.broadcast %c1_i32_19 : i32 to vector<32x128xi32>
      %49 = arith.cmpi slt, %46, %48 : vector<32x128xi32>
      %cst_20 = arith.constant 0.000000e+00 : f32
      %50 = vector.broadcast %cst_20 : f32 to vector<32x128xf32>
      %51 = arith.select %49, %30, %50 : vector<32x128xi1>, vector<32x128xf32>
      %52 = arith.addf %47, %51 : vector<32x128xf32>
      %c0_21 = arith.constant 0 : index
      %c0_22 = arith.constant 0 : index
      %53 = vector.load %arg5[%c0_21, %c0_22] : memref<32x128xf32, #tpu.memory_space<vmem>>, vector<32x128xf32>
      tpu.vector_store %arg5[%c0_21, %c0_22], %52 {strides = array<i32>} : memref<32x128xf32, #tpu.memory_space<vmem>>, vector<32x128xf32>,
    } else {
    }
    %c0_i32_15 = arith.constant 0 : i32
    %41 = arith.cmpi eq, %arg1, %c0_i32_15 : i32
    %42 = arith.extui %41 : i1 to i32
    %c0_i32_16 = arith.constant 0 : i32
    %43 = arith.cmpi ne, %42, %c0_i32_16 : i32
    scf.if %43 {
      %c0_17 = arith.constant 0 : index
      %c0_18 = arith.constant 0 : index
      %44 = vector.load %arg5[%c0_17, %c0_18] : memref<32x128xf32, #tpu.memory_space<vmem>>, vector<32x128xf32>
      %45 = vector.shape_cast %44 : vector<32x128xf32> to vector<1x32x128xf32>
      %cst_19 = arith.constant dense<0.000000e+00> : vector<1xf32>
      %46 = vector.multi_reduction <add>, %45, %cst_19 [1, 2] : vector<1x32x128xf32> to vector<1xf32>
      %47 = vector.shape_cast %46 : vector<1xf32> to vector<1x1x1xf32>
      %48 = vector.extract %47[0, 0, 0] : f32 from vector<1x1x1xf32>
      %49 = tpu.iota {dimensions = array<i32: 0>} : vector<8x128xi32>
      %50 = tpu.iota {dimensions = array<i32: 1>} : vector<8x128xi32>
      %c0_i32_20 = arith.constant 0 : i32
      %51 = vector.broadcast %c0_i32_20 : i32 to vector<8x128xi32>
      %52 = arith.cmpi eq, %49, %51 : vector<8x128xi32>
      %c0_i32_21 = arith.constant 0 : i32
      %53 = vector.broadcast %c0_i32_21 : i32 to vector<8x128xi32>
      %54 = arith.cmpi eq, %50, %53 : vector<8x128xi32>
      %55 = arith.andi %52, %54 : vector<8x128xi1>
      %cst_22 = arith.constant 0.000000e+00 : f32
      %56 = vector.broadcast %48 : f32 to vector<8x128xf32>
      %57 = vector.broadcast %cst_22 : f32 to vector<8x128xf32>
      %58 = arith.select %55, %56, %57 : vector<8x128xi1>, vector<8x128xf32>
      %c0_23 = arith.constant 0 : index
      %c0_24 = arith.constant 0 : index
      %59 = vector.load %arg4[%c0_23, %c0_24] : memref<8x128xf32, #tpu.memory_space<vmem>>, vector<8x128xf32>
      tpu.vector_store %arg4[%c0_23, %c0_24], %58 {strides = array<i32>} : memref<8x128xf32, #tpu.memory_space<vmem>>, vector<8x128xf32>,
    } else {
    }
    return
  }
  func.func @transform_0(%arg0: i32, %arg1: i32) -> (i32, i32) {
    %c1_i32 = arith.constant 1 : i32
    %0 = arith.muli %arg0, %c1_i32 : i32
    %1 = arith.addi %0, %arg1 : i32
    %c0_i32 = arith.constant 0 : i32
    %2 = arith.minsi %1, %c0_i32 : i32
    %c0_i32_0 = arith.constant 0 : i32
    %c0_i32_1 = arith.constant 0 : i32
    return %2, %c0_i32_0 : i32, i32
  }
  func.func @transform_1(%arg0: i32, %arg1: i32) -> (i32, i32) {
    %c1_i32 = arith.constant 1 : i32
    %0 = arith.muli %arg0, %c1_i32 : i32
    %1 = arith.addi %0, %arg1 : i32
    %c0_i32 = arith.constant 0 : i32
    %2 = arith.minsi %1, %c0_i32 : i32
    %c0_i32_0 = arith.constant 0 : i32
    %c0_i32_1 = arith.constant 0 : i32
    return %2, %c0_i32_0 : i32, i32
  }
  func.func @transform_2(%arg0: i32, %arg1: i32) -> (i32, i32) {
    %c0_i32 = arith.constant 0 : i32
    %c0_i32_0 = arith.constant 0 : i32
    return %c0_i32, %arg0 : i32, i32
  }
}

</mosaic_0001>

<llo_original>
// kernel: focal_loss.1
$region0: #{focal_loss.1}
  #allocation0 [shape = 'u32[]', space=smem, size = 0x4, offset = 0x4, fixed_abs, tag = 'smem constant byte address 0x4 - core index']
  #allocation1 [shape = 'u32[72,128]{1,0:T(1,128)}', space=vmem, size = 0x9000, scoped, tag = 'internal scratch']
  #allocation2 [shape = 'f32[32,128]{1,0:T(8,128)}', space=vmem, size = 0x4000, scoped, tag = 'scratch operand']
  %s0 = inlined_call_operand.vmem [shape: f32[32,128], index: 0, kind: input, shape index: {}]
  %s1 = inlined_call_operand.vmem [shape: s8[32,128], index: 1, kind: input, shape index: {}]
  %s2 = inlined_call_operand.vmem [shape: f32[8,128], index: 2, kind: output, shape index: {}]
  %s3 = sld [smem:[#allocation0]]
  $region34: #{focal_loss.1} parent=0
    _
  %s5 = ssub.s32 1, %s3
  %s6 = scalar_select 0, %s5, %s3
  // Predicated region
  $region2: #{focal_loss.1} parent=0 // pred_check
    _
  $region3: #{focal_loss.1} parent=0 // pred_check_branch
    %8 = sbr.rel (0) target = $region5
  $region4: #{focal_loss.1} parent=0 // pred_region
    %s9 = sadd.s32 0, 0
    %p10 = scmp.lt.s32.totalorder %s9, 0
    %s11 = scalar_select %p10, %s9, 0
    %s12 = smul.u32 4, %s11
    %p13 = scmp.lt.s32.totalorder %s12, 3
    %s14 = scalar_select %p13, %s12, 3
    %s15 = smul.addr %s14, 8
    %s16 = scalar_lea.vmem %s0, %s15
    %s17 = sadd.s32 0, 0
    %p18 = scmp.lt.s32.totalorder %s17, 0
    %s19 = scalar_select %p18, %s17, 0
    %s20 = smul.u32 4, %s19
  $region5: #{focal_loss.1} parent=0 // pred_fallthru
    _
  // Predicated region
  $region6: #{focal_loss.1} parent=0 // pred_check
    _
  $region7: #{focal_loss.1} parent=0 // pred_check_branch
    %22 = sbr.rel (0) target = $region9
  $region8: #{focal_loss.1} parent=0 // pred_region
    %s23 = sadd.s32 0, 0
    %p24 = scmp.lt.s32.totalorder %s23, 0
    %s25 = scalar_select %p24, %s23, 0
    %p26 = scmp.lt.s32.totalorder %s25, 0
    %s27 = scalar_select %p26, %s25, 0
    %s28 = smul.addr %s27, 8
    %s29 = scalar_lea.vmem %s1, %s28
    %s30 = sadd.s32 0, 0
    %p31 = scmp.lt.s32.totalorder %s30, 0
    %s32 = scalar_select %p31, %s30, 0
  $region9: #{focal_loss.1} parent=0 // pred_fallthru
    _
  %s33 = sadd.s32 0, 0
  %p34 = scmp.lt.s32.totalorder %s33, 0
  %s35 = scalar_select %p34, %s33, 0
  %s36 = smul.u32 4, %s35
  %p37 = scmp.lt.s32.totalorder %s36, 3
  %s38 = scalar_select %p37, %s36, 3
  %s39 = smul.addr %s38, 8
  %s40 = scalar_lea.vmem %s0, %s39
  %s41 = sadd.s32 0, 0
  %p42 = scmp.lt.s32.totalorder %s41, 0
  %s43 = scalar_select %p42, %s41, 0
  %p44 = scmp.lt.s32.totalorder %s43, 0
  %s45 = scalar_select %p44, %s43, 0
  %s46 = smul.addr %s45, 8
  %s47 = scalar_lea.vmem %s1, %s46
  %s48 = sadd.s32 0, 0
  %p49 = scmp.lt.s32.totalorder %s48, 0
  %s50 = scalar_select %p49, %s48, 0
  %s51 = smul.u32 4, %s50
  %p52 = scmp.lt.s32.totalorder %s51, 3
  %s53 = scalar_select %p52, %s51, 3
  %s54 = smul.addr %s53, 8
  %s55 = scalar_lea.vmem %s0, %s54
  %s56 = sadd.s32 0, 0
  %p57 = scmp.lt.s32.totalorder %s56, 0
  %s58 = scalar_select %p57, %s56, 0
  %s59 = smul.u32 4, %s58
  %s60 = sadd.s32 0, 0
  %p61 = scmp.lt.s32.totalorder %s60, 0
  %s62 = scalar_select %p61, %s60, 0
  %p63 = scmp.lt.s32.totalorder %s62, 0
  %s64 = scalar_select %p63, %s62, 0
  %s65 = smul.addr %s64, 8
  %s66 = scalar_lea.vmem %s1, %s65
  %s67 = sadd.s32 0, 0
  %p68 = scmp.lt.s32.totalorder %s67, 0
  %s69 = scalar_select %p68, %s67, 0
  %p72 = scmp.eq.s32.totalorder 0, 0
  // Predicated region
  $region10: #{focal_loss.1} parent=0 // pred_check
    %p73 = pneg %p72
  $region11: #{focal_loss.1} parent=0 // pred_check_branch
    %75 = sbr.rel (%p73) target = $region13
  $region12: #{focal_loss.1} parent=0 // pred_region
    %76 = vst [vmem:[#allocation2] sm:$0xff] 0.0
    %77 = vst [vmem:[#allocation2 + $0x8] sm:$0xff] 0.0
    %78 = vst [vmem:[#allocation2 + $0x10] sm:$0xff] 0.0
    %79 = vst [vmem:[#allocation2 + $0x18] sm:$0xff] 0.0
  $region13: #{focal_loss.1} parent=0 // pred_fallthru
    _
  %v80 = vld [vmem:[%s55] sm:$0xff]
  %v81 = vld [vmem:[%s55 + $0x8] sm:$0xff]
  %v82 = vld [vmem:[%s55 + $0x10] sm:$0xff]
  %v83 = vld [vmem:[%s55 + $0x18] sm:$0xff]
  %v84 = vld [vmem:[%s66] sm:$0xff]
  %vm85 = vnez %v84
  %v86 = vsub.f32 0.0, %v80
  %v87 = vsub.f32 0.0, %v81
  %v88 = vsub.f32 0.0, %v82
  %v89 = vsub.f32 0.0, %v83
  %v90 = vsel %vm85, 16843009, 0
  %v91 = vunpack.c.0.s8 %v90
  %v92 = vunpack.c.1.s8 %v90
  %v93 = vunpack.c.2.s8 %v90
  %v94 = vunpack.c.3.s8 %v90
  %v95 = vpack.c.b16 %v91, %v91
  %v96 = vpack.c.b8 %v95, %v95
  %v97 = vpack.c.b16 %v92, %v92
  %v98 = vpack.c.b8 %v97, %v97
  %v99 = vpack.c.b16 %v93, %v93
  %v100 = vpack.c.b8 %v99, %v99
  %v101 = vpack.c.b16 %v94, %v94
  %v102 = vpack.c.b8 %v101, %v101
  %vm103 = vnez %v96
  %vm104 = vnez %v98
  %vm105 = vnez %v100
  %vm106 = vnez %v102
  %v107 = vsel %vm103, 16843009, 0
  %v108 = vsel %vm104, 16843009, 0
  %v109 = vsel %vm105, 16843009, 0
  %v110 = vsel %vm106, 16843009, 0
  %v111 = vunpack.c.0.s8 %v107
  %v112 = vunpack.c.0.s8 %v108
  %v113 = vunpack.c.0.s8 %v109
  %v114 = vunpack.c.0.s8 %v110
  %vm115 = vcmp.ne.s32.totalorder %v111, 0
  %vm116 = vcmp.ne.s32.totalorder %v112, 0
  %vm117 = vcmp.ne.s32.totalorder %v113, 0
  %vm118 = vcmp.ne.s32.totalorder %v114, 0
  %v119 = vsel %vm115, %v86, %v80
  %v120 = vsel %vm116, %v87, %v81
  %v121 = vsel %vm117, %v88, %v82
  %v122 = vsel %vm118, %v89, %v83
  %v123 = vand.u32 2147483647, %v80
  %v124 = vand.u32 2147483647, %v81
  %v125 = vand.u32 2147483647, %v82
  %v126 = vand.u32 2147483647, %v83
  %v127 = vsub.f32 0.0, %v123
  %v128 = vsub.f32 0.0, %v124
  %v129 = vsub.f32 0.0, %v125
  %v130 = vsub.f32 0.0, %v126
  %v131 = vmul.f32 %v127, 1.442695
  %v132 = vpow.pop %v131
  %v133 = vmul.f32 %v128, 1.442695
  %v134 = vpow.pop %v133
  %v135 = vmul.f32 %v129, 1.442695
  %v136 = vpow.pop %v135
  %v137 = vmul.f32 %v130, 1.442695
  %v138 = vpow.pop %v137
  %v139 = vmax.f32 %v119, 0.0
  %v140 = vmax.f32 %v120, 0.0
  %v141 = vmax.f32 %v121, 0.0
  %v142 = vmax.f32 %v122, 0.0
  %v143 = vadd.f32 %v132, 1.0
  %v144 = vlog2.pop %v143
  %v145 = vmul.f32 %v144, 0.6931472
  %v146 = vmul.f32 -0.5, %v132
  %v147 = vadd.f32 %v146, 1.0
  %v148 = vmul.f32 %v147, %v132
  %v149 = vand.u32 2147483647, %v132
  %vm150 = vcmp.lt.f32.partialorder %v149, 0.0004427343
  %v151 = vsel %vm150, %v148, %v145
  %v152 = vadd.f32 %v134, 1.0
  %v153 = vlog2.pop %v152
  %v154 = vmul.f32 %v153, 0.6931472
  %v155 = vmul.f32 -0.5, %v134
  %v156 = vadd.f32 %v155, 1.0
  %v157 = vmul.f32 %v156, %v134
  %v158 = vand.u32 2147483647, %v134
  %vm159 = vcmp.lt.f32.partialorder %v158, 0.0004427343
  %v160 = vsel %vm159, %v157, %v154
  %v161 = vadd.f32 %v136, 1.0
  %v162 = vlog2.pop %v161
  %v163 = vmul.f32 %v162, 0.6931472
  %v164 = vmul.f32 -0.5, %v136
  %v165 = vadd.f32 %v164, 1.0
  %v166 = vmul.f32 %v165, %v136
  %v167 = vand.u32 2147483647, %v136
  %vm168 = vcmp.lt.f32.partialorder %v167, 0.0004427343
  %v169 = vsel %vm168, %v166, %v163
  %v170 = vadd.f32 %v138, 1.0
  %v171 = vlog2.pop %v170
  %v172 = vmul.f32 %v171, 0.6931472
  %v173 = vmul.f32 -0.5, %v138
  %v174 = vadd.f32 %v173, 1.0
  %v175 = vmul.f32 %v174, %v138
  %v176 = vand.u32 2147483647, %v138
  %vm177 = vcmp.lt.f32.partialorder %v176, 0.0004427343
  %v178 = vsel %vm177, %v175, %v172
  %v179 = vadd.f32 %v139, %v151
  %v180 = vadd.f32 %v140, %v160
  %v181 = vadd.f32 %v141, %v169
  %v182 = vadd.f32 %v142, %v178
  %vm183 = vcmp.ge.f32.partialorder %v119, 0.0
  %vm184 = vcmp.ge.f32.partialorder %v120, 0.0
  %vm185 = vcmp.ge.f32.partialorder %v121, 0.0
  %vm186 = vcmp.ge.f32.partialorder %v122, 0.0
  %v187 = vsel %vm183, %v132, 1.0
  %v188 = vsel %vm184, %v134, 1.0
  %v189 = vsel %vm185, %v136, 1.0
  %v190 = vsel %vm186, %v138, 1.0
  %v191 = vadd.f32 %v132, 1.0
  %v192 = vadd.f32 %v134, 1.0
  %v193 = vadd.f32 %v136, 1.0
  %v194 = vadd.f32 %v138, 1.0
  %v195 = vrcp.pop %v191
  %v196 = vmul.f32 %v191, %v195
  %v197 = vsub.f32 1.0, %v196
  %v198 = vmul.f32 %v195, %v197
  %v199 = vadd.f32 %v195, %v198
  %vm200 = vweird.f32 %v191
  %vm201 = vweird.f32 %v195
  %vm202 = vmor %vm200, %vm201
  %v203 = vsel %vm202, %v195, %v199
  %v204 = vand.u32 2147483647, %v191
  %vm205 = vcmp.eq.f32.partialorder %v204, 8.507059e+37
  %v206 = vand.u32 %v191, 2147483648
  %v207 = vor.u32 1.1754944e-38, %v206
  %v208 = vsel %vm205, %v207, %v203
  %v209 = vmul.f32 %v187, %v208
  %v210 = vrcp.pop %v192
  %v211 = vmul.f32 %v192, %v210
  %v212 = vsub.f32 1.0, %v211
  %v213 = vmul.f32 %v210, %v212
  %v214 = vadd.f32 %v210, %v213
  %vm215 = vweird.f32 %v192
  %vm216 = vweird.f32 %v210
  %vm217 = vmor %vm215, %vm216
  %v218 = vsel %vm217, %v210, %v214
  %v219 = vand.u32 2147483647, %v192
  %vm220 = vcmp.eq.f32.partialorder %v219, 8.507059e+37
  %v221 = vand.u32 %v192, 2147483648
  %v222 = vor.u32 1.1754944e-38, %v221
  %v223 = vsel %vm220, %v222, %v218
  %v224 = vmul.f32 %v188, %v223
  %v225 = vrcp.pop %v193
  %v226 = vmul.f32 %v193, %v225
  %v227 = vsub.f32 1.0, %v226
  %v228 = vmul.f32 %v225, %v227
  %v229 = vadd.f32 %v225, %v228
  %vm230 = vweird.f32 %v193
  %vm231 = vweird.f32 %v225
  %vm232 = vmor %vm230, %vm231
  %v233 = vsel %vm232, %v225, %v229
  %v234 = vand.u32 2147483647, %v193
  %vm235 = vcmp.eq.f32.partialorder %v234, 8.507059e+37
  %v236 = vand.u32 %v193, 2147483648
  %v237 = vor.u32 1.1754944e-38, %v236
  %v238 = vsel %vm235, %v237, %v233
  %v239 = vmul.f32 %v189, %v238
  %v240 = vrcp.pop %v194
  %v241 = vmul.f32 %v194, %v240
  %v242 = vsub.f32 1.0, %v241
  %v243 = vmul.f32 %v240, %v242
  %v244 = vadd.f32 %v240, %v243
  %vm245 = vweird.f32 %v194
  %vm246 = vweird.f32 %v240
  %vm247 = vmor %vm245, %vm246
  %v248 = vsel %vm247, %v240, %v244
  %v249 = vand.u32 2147483647, %v194
  %vm250 = vcmp.eq.f32.partialorder %v249, 8.507059e+37
  %v251 = vand.u32 %v194, 2147483648
  %v252 = vor.u32 1.1754944e-38, %v251
  %v253 = vsel %vm250, %v252, %v248
  %v254 = vmul.f32 %v190, %v253
  %v255 = vsub.f32 1.0, %v209
  %v256 = vsub.f32 1.0, %v224
  %v257 = vsub.f32 1.0, %v239
  %v258 = vsub.f32 1.0, %v254
  %v259 = vmul.f32 %v255, %v255
  %v260 = vmul.f32 %v256, %v256
  %v261 = vmul.f32 %v257, %v257
  %v262 = vmul.f32 %v258, %v258
  %v263 = vmul.f32 %v259, %v179
  %v264 = vmul.f32 %v260, %v180
  %v265 = vmul.f32 %v261, %v181
  %v266 = vmul.f32 %v262, %v182
  %s267 = sadd.s32 0, 0
  %s268 = smul.u32 %s267, 32
  %s269 = sadd.s32 %s268, 32
  %p270 = scmp.le.s32.totalorder %s269, 1
  // Predicated region
  $region14: #{focal_loss.1} parent=0 // pred_check
    %p271 = pneg %p270
  $region15: #{focal_loss.1} parent=0 // pred_check_branch
    %273 = sbr.rel (%p271) target = $region17
  $region16: #{focal_loss.1} parent=0 // pred_region
    %v274 = vld [vmem:[#allocation2] sm:$0xff]
    %v275 = vld [vmem:[#allocation2 + $0x8] sm:$0xff]
    %v276 = vld [vmem:[#allocation2 + $0x10] sm:$0xff]
    %v277 = vld [vmem:[#allocation2 + $0x18] sm:$0xff]
    %v278 = vadd.f32 %v274, %v263
    %v279 = vadd.f32 %v275, %v264
    %v280 = vadd.f32 %v276, %v265
    %v281 = vadd.f32 %v277, %v266
    %282 = vst [vmem:[#allocation2] sm:$0xff] %v278
    %283 = vst [vmem:[#allocation2 + $0x8] sm:$0xff] %v279
    %284 = vst [vmem:[#allocation2 + $0x10] sm:$0xff] %v280
    %285 = vst [vmem:[#allocation2 + $0x18] sm:$0xff] %v281
  $region17: #{focal_loss.1} parent=0 // pred_fallthru
    _
  %p286 = scmp.gt.s32.totalorder %s269, 1
  // Predicated region
  $region18: #{focal_loss.1} parent=0 // pred_check
    %p287 = pneg %p286
  $region19: #{focal_loss.1} parent=0 // pred_check_branch
    %289 = sbr.rel (%p287) target = $region21
  $region20: #{focal_loss.1} parent=0 // pred_region
    %v290 = vlaneseq
    %v291 = vshrl.u32 %v290, 7
    %v292 = vadd.s32 %v291, 8
    %v293 = vadd.s32 %v291, 16
    %v294 = vadd.s32 %v291, 24
    %v295 = vstv %s268
    %v296 = vadd.s32 %v295, %v291
    %v297 = vadd.s32 %v295, %v292
    %v298 = vadd.s32 %v295, %v293
    %v299 = vadd.s32 %v295, %v294
    %v300 = vld [vmem:[#allocation2] sm:$0xff]
    %v301 = vld [vmem:[#allocation2 + $0x8] sm:$0xff]
    %v302 = vld [vmem:[#allocation2 + $0x10] sm:$0xff]
    %v303 = vld [vmem:[#allocation2 + $0x18] sm:$0xff]
    %vm304 = vcmp.lt.s32.totalorder %v296, 1
    %vm305 = vcmp.lt.s32.totalorder %v297, 1
    %vm306 = vcmp.lt.s32.totalorder %v298, 1
    %vm307 = vcmp.lt.s32.totalorder %v299, 1
    %v308 = vsel %vm304, %v263, 0.0
    %v309 = vsel %vm305, %v264, 0.0
    %v310 = vsel %vm306, %v265, 0.0
    %v311 = vsel %vm307, %v266, 0.0
    %v312 = vadd.f32 %v300, %v308
    %v313 = vadd.f32 %v301, %v309
    %v314 = vadd.f32 %v302, %v310
    %v315 = vadd.f32 %v303, %v311
    %316 = vst [vmem:[#allocation2] sm:$0xff] %v312
    %317 = vst [vmem:[#allocation2 + $0x8] sm:$0xff] %v313
    %318 = vst [vmem:[#allocation2 + $0x10] sm:$0xff] %v314
    %319 = vst [vmem:[#allocation2 + $0x18] sm:$0xff] %v315
  $region21: #{focal_loss.1} parent=0 // pred_fallthru
    _
  // Predicated region
  $region22: #{focal_loss.1} parent=0 // pred_check
    %p320 = pneg %p72
  $region23: #{focal_loss.1} parent=0 // pred_check_branch
    %322 = sbr.rel (%p320) target = $region25
  $region24: #{focal_loss.1} parent=0 // pred_region
    %v323 = vld [vmem:[#allocation2] sm:$0xff]
    %v324 = vld [vmem:[#allocation2 + $0x8] sm:$0xff]
    %v325 = vld [vmem:[#allocation2 + $0x10] sm:$0xff]
    %v326 = vld [vmem:[#allocation2 + $0x18] sm:$0xff]
    %v327 = vadd.f32 %v323, %v324
    %v328 = vadd.f32 %v327, %v325
    %v329 = vadd.f32 %v328, %v326
    %330 = vadd.xlane.f32.xlu0 %v329
    %v331 = vpop.xlane.xlu0 %330
    %v332 = vrot.slane %v331, 4
    %v333 = vadd.f32 %v331, %v332
    %v334 = vrot.slane %v333, 2
    %v335 = vadd.f32 %v333, %v334
    %v336 = vrot.slane %v335, 1
    %v337 = vadd.f32 %v335, %v336
    %s338 = vtos %v337
    %v339 = vlaneseq
    %v340 = vshrl.u32 %v339, 7
    %v341 = vlaneseq
    %v342 = vand.u32 %v341, 127
    %vm343 = vcmp.eq.s32.totalorder %v340, 0
    %vm344 = vcmp.eq.s32.totalorder %v342, 0
    %vm345 = vmand %vm343, %vm344
    %v346 = vstv %s338
    %v347 = vsel %vm345, %v346, 0.0
    %348 = vst [vmem:[%s2] sm:$0xff] %v347
  $region25: #{focal_loss.1} parent=0 // pred_fallthru
    _
  // Predicated region
  $region26: #{focal_loss.1} parent=0 // pred_check
    _
  $region27: #{focal_loss.1} parent=0 // pred_check_branch
    %350 = sbr.rel (0) target = $region29
  $region28: #{focal_loss.1} parent=0 // pred_region
    _
  $region29: #{focal_loss.1} parent=0 // pred_fallthru
    _
  // Predicated region
  $region30: #{focal_loss.1} parent=0 // pred_check
    _
  $region31: #{focal_loss.1} parent=0 // pred_check_branch
    %352 = sbr.rel (0) target = $region33
  $region32: #{focal_loss.1} parent=0 // pred_region
    _
  $region33: #{focal_loss.1} parent=0 // pred_fallthru
    _

</llo_original>
